<compile_context>
chip_gen: v5e
topology: v5e:2x2
jax: 0.10.0
libtpu: 0.0.40
codegen_flags: <defaults>
</compile_context>

<pallas_src>
import functools

import jax
import jax.numpy as jnp
from jax.experimental import pallas as pl
from jax.experimental.pallas import tpu as pltpu


def _round_up(a: int, b: int) -> int:
    return (a + b - 1) // b * b


def _pad_axis(a, target: int, axis: int):
    pad = target - a.shape[axis]
    if pad == 0:
        return a
    widths = [(0, 0)] * a.ndim
    widths[axis] = (0, pad)
    return jnp.pad(a, widths)


def _pool_fc_kernel_single(x_ref, w_ref, b_ref, o_ref):
    # x_ref: (tn, K)  w_ref: (K, O_pad)  b_ref: (1, O_pad) f32  o_ref: (tn, O_pad)
    # Whole reduction in one MXU matmul; f32 accumulation; no scratch needed.
    o_ref[...] = (
        jnp.dot(x_ref[...], w_ref[...], preferred_element_type=jnp.float32)
        + b_ref[...]
    ).astype(o_ref.dtype)


def _pool_fc_kernel_multi(x_ref, w_ref, b_ref, o_ref, acc_ref):
    # x_ref: (tn, tk)  w_ref: (tk, O_pad)  b_ref: (1, O_pad) f32
    # o_ref: (tn, O_pad)                   acc_ref: (tn, O_pad) f32 scratch
    k = pl.program_id(1)

    @pl.when(k == 0)
    def _():
        acc_ref[...] = jnp.zeros_like(acc_ref)

    acc_ref[...] += jnp.dot(x_ref[...], w_ref[...],
                            preferred_element_type=jnp.float32)

    @pl.when(k == pl.num_programs(1) - 1)
    def _():
        o_ref[...] = (acc_ref[...] + b_ref[...]).astype(o_ref.dtype)


@functools.partial(jax.jit, static_argnames=("tile_n", "tile_k"))
def glob_avg_output(x, weight, bias, *, tile_n=256, tile_k=2048):
    """x: (N, C, L); weight: (num_outputs, C) [PyTorch layout]; bias: (num_outputs,)."""
    n, c, l = x.shape
    o = weight.shape[0]
    k = c * l

    # --- wrapper-side layout prep (outside the kernel, runs once per call) ---
    # Flatten x to (N, C*L): lane-dense last dim instead of tiny L on lanes.
    x_flat = x.reshape(n, k)
    # Expand + pre-scale the weight: row (c*L + l) = weight[:, c] / L.
    w_exp = (jnp.repeat(weight.T / l, l, axis=0)).astype(x.dtype)   # (K, O)

    # Pad the output/lane dim to a multiple of 128 -> unmasked vector stores.
    o_pad = _round_up(o, 128)
    w_exp = _pad_axis(w_exp, o_pad, axis=1)
    b2d = _pad_axis(bias.astype(jnp.float32).reshape(1, o), o_pad, axis=1)

    # Reduction (K) tiling: tk multiple of 128; zero-pad K so the reduction is exact.
    tk = min(tile_k, _round_up(k, 128))
    k_pad = _round_up(k, tk)
    x_flat = _pad_axis(x_flat, k_pad, axis=1)
    w_exp = _pad_axis(w_exp, k_pad, axis=0)
    grid_k = k_pad // tk

    # N tiling: one full-extent block for small N, else 8-aligned tiles
    # (rows are independent; Pallas masks the partial last block).
    tn = n if n <= tile_n else tile_n
    grid_n = pl.cdiv(n, tn)

    dtype_bytes = jnp.dtype(x.dtype).itemsize
    cost = pl.CostEstimate(
        flops=2 * n * k_pad * o_pad,
        transcendentals=0,
        bytes_accessed=n * k_pad * dtype_bytes
        + k_pad * o_pad * dtype_bytes
        + n * o_pad * dtype_bytes,
    )
    cparams = pltpu.CompilerParams(
        dimension_semantics=("parallel",) if grid_k == 1 else ("parallel", "arbitrary"),
        vmem_limit_bytes=48 * 1024 * 1024,
    )

    if grid_k == 1:
        # Fast path: whole K reduction in a single MXU call, no accumulator scratch.
        grid_spec = pltpu.PrefetchScalarGridSpec(
            num_scalar_prefetch=0,
            grid=(grid_n,),
            in_specs=[
                pl.BlockSpec((tn, tk), lambda i: (i, 0)),        # x tiles
                pl.BlockSpec((tk, o_pad), lambda i: (0, 0)),     # weight: resident
                pl.BlockSpec((1, o_pad), lambda i: (0, 0)),      # bias: resident
            ],
            out_specs=pl.BlockSpec((tn, o_pad), lambda i: (i, 0)),
        )
        kernel = _pool_fc_kernel_single
    else:
        grid_spec = pltpu.PrefetchScalarGridSpec(
            num_scalar_prefetch=0,
            grid=(grid_n, grid_k),
            in_specs=[
                pl.BlockSpec((tn, tk), lambda i, kk: (i, kk)),      # x tiles
                pl.BlockSpec((tk, o_pad), lambda i, kk: (kk, 0)),   # weight stream
                pl.BlockSpec((1, o_pad), lambda i, kk: (0, 0)),     # bias: resident
            ],
            out_specs=pl.BlockSpec((tn, o_pad), lambda i, kk: (i, 0)),
            scratch_shapes=[pltpu.VMEM((tn, o_pad), jnp.float32)],
        )
        kernel = _pool_fc_kernel_multi

    out_padded = pl.pallas_call(
        kernel,
        out_shape=jax.ShapeDtypeStruct((n, o_pad), x.dtype),
        grid_spec=grid_spec,
        compiler_params=cparams,
        cost_estimate=cost,
    )(x_flat, w_exp, b2d)

    return out_padded[:, :o] if o_pad != o else out_padded


if __name__ == "__main__":
    # Small shapes consistent with the module: in_planes channels, length L.
    batch, in_planes, length, num_outputs = 2, 32, 16, 8

    key = jax.random.PRNGKey(0)
    kx, kw, kb = jax.random.split(key, 3)

    x = jax.random.normal(kx, (batch, in_planes, length), dtype=jnp.float32)
    # Deterministic synthetic parameters (PyTorch Linear shapes: (out, in), (out,)).
    bound = 1.0 / (in_planes ** 0.5)
    weight = jax.random.uniform(kw, (num_outputs, in_planes), jnp.float32,
                                minval=-bound, maxval=bound)
    bias = jax.random.uniform(kb, (num_outputs,), jnp.float32,
                              minval=-bound, maxval=bound)

    out = glob_avg_output(x, weight, bias)
    jax.block_until_ready(out)

    # Pure-JAX reference check (pool then FC).
    ref = jnp.mean(x, axis=-1) @ weight.T + bias
    assert out.shape == (batch, num_outputs)
    assert jnp.allclose(out, ref, atol=1e-4, rtol=1e-4)

    print("KERNEL_OK")
</pallas_src>

<mosaic_0001>
module attributes {stable_mosaic.version = 11 : i64} {
  func.func @_pool_fc_kernel_single(%arg0: i32, %arg1: memref<2x512xf32, #tpu.memory_space<vmem>>, %arg2: memref<512x128xf32, #tpu.memory_space<vmem>>, %arg3: memref<1x128xf32, #tpu.memory_space<vmem>>, %arg4: memref<2x128xf32, #tpu.memory_space<vmem>>) attributes {dimension_semantics = [#tpu.dimension_semantics<parallel>], iteration_bounds = array<i64: 1>, scalar_prefetch = 0 : i64, scratch_operands = 0 : i64, tpu.core_type = #tpu.core_type<tc>, window_params = [{transform_indices = @transform_0, window_bounds = array<i64: 2, 512>}, {pipeline_mode = #tpu.pipeline_mode<synchronous>, transform_indices = @transform_1, window_bounds = array<i64: 512, 128>}, {pipeline_mode = #tpu.pipeline_mode<synchronous>, transform_indices = @transform_2, window_bounds = array<i64: 1, 128>}, {transform_indices = @transform_3, window_bounds = array<i64: 2, 128>}]} {
    %c0 = arith.constant 0 : index
    %c0_0 = arith.constant 0 : index
    %0 = vector.load %arg1[%c0, %c0_0] : memref<2x512xf32, #tpu.memory_space<vmem>>, vector<2x512xf32>
    %c0_1 = arith.constant 0 : index
    %c0_2 = arith.constant 0 : index
    %1 = vector.load %arg2[%c0_1, %c0_2] : memref<512x128xf32, #tpu.memory_space<vmem>>, vector<512x128xf32>
    %cst = arith.constant dense<0.000000e+00> : vector<2x128xf32>
    %2 = tpu.matmul %0, %1, %cst {dimension_numbers = #tpu.dot_dimension_numbers<[1], [0], [0], [1], [0, 0, 1, 1], [], []>} : vector<2x512xf32>, vector<512x128xf32>, vector<2x128xf32> -> vector<2x128xf32>
    %c0_3 = arith.constant 0 : index
    %c0_4 = arith.constant 0 : index
    %3 = vector.load %arg3[%c0_3, %c0_4] : memref<1x128xf32, #tpu.memory_space<vmem>>, vector<1x128xf32>
    %4 = vector.broadcast %3 : vector<1x128xf32> to vector<2x128xf32>
    %5 = arith.addf %2, %4 : vector<2x128xf32>
    %c0_5 = arith.constant 0 : index
    %c0_6 = arith.constant 0 : index
    %6 = vector.load %arg4[%c0_5, %c0_6] : memref<2x128xf32, #tpu.memory_space<vmem>>, vector<2x128xf32>
    tpu.vector_store %arg4[%c0_5, %c0_6], %5 {strides = array<i32>} : memref<2x128xf32, #tpu.memory_space<vmem>>, vector<2x128xf32>,
    return
  }
  func.func @transform_0(%arg0: i32) -> (i32, i32) {
    %c0_i32 = arith.constant 0 : i32
    %c0_i32_0 = arith.constant 0 : i32
    return %arg0, %c0_i32 : i32, i32
  }
  func.func @transform_1(%arg0: i32) -> (i32, i32) {
    %c0_i32 = arith.constant 0 : i32
    %c0_i32_0 = arith.constant 0 : i32
    %c0_i32_1 = arith.constant 0 : i32
    return %c0_i32, %c0_i32_0 : i32, i32
  }
  func.func @transform_2(%arg0: i32) -> (i32, i32) {
    %c0_i32 = arith.constant 0 : i32
    %c0_i32_0 = arith.constant 0 : i32
    %c0_i32_1 = arith.constant 0 : i32
    return %c0_i32, %c0_i32_0 : i32, i32
  }
  func.func @transform_3(%arg0: i32) -> (i32, i32) {
    %c0_i32 = arith.constant 0 : i32
    %c0_i32_0 = arith.constant 0 : i32
    return %arg0, %c0_i32 : i32, i32
  }
}

</mosaic_0001>

<llo_original>
// kernel: glob_avg_output.1
$region0: #{glob_avg_output.1}
  #allocation0 [shape = 'u32[]', space=smem, size = 0x4, offset = 0x4, fixed_abs, tag = 'smem constant byte address 0x4 - core index']
  #allocation1 [shape = 'u32[72,128]{1,0:T(1,128)}', space=vmem, size = 0x9000, scoped, tag = 'internal scratch']
  %s0 = inlined_call_operand.vmem [shape: f32[2,512], index: 0, kind: input, shape index: {}]
  %s1 = inlined_call_operand.vmem [shape: f32[512,128], index: 1, kind: input, shape index: {}]
  %s2 = inlined_call_operand.vmem [shape: f32[1,128], index: 2, kind: input, shape index: {}]
  %s3 = inlined_call_operand.hbm [shape: f32[2,128], index: 3, kind: output, shape index: {}]
  %s4 = sld [smem:[#allocation0]]
  $region22: #{glob_avg_output.1} parent=0
    _
  %s6 = ssub.s32 1, %s4
  %s7 = scalar_select 0, %s6, %s4
  $region1: #{glob_avg_output.1} parent=0
    #allocation2 [shape = 'u8[1024]{0}', space=vmem, size = 0x400, scoped, tag = 'output window, operand 0, single buffered']
    #allocation3 [shape = 's32[1]{0}', space=sflag, size = 0x4, scoped, tag = 'scoped memory for glob_avg_output.1']
    %8 = vsyncpa [#allocation3], 0
    // Predicated region
    $region2: #{glob_avg_output.1} parent=1 // pred_check
      _
    $region3: #{glob_avg_output.1} parent=1 // pred_check_branch
      %10 = sbr.rel (0) target = $region5
    $region4: #{glob_avg_output.1} parent=1 // pred_region
      _
    $region5: #{glob_avg_output.1} parent=1 // pred_fallthru
      _
    // Predicated region
    $region6: #{glob_avg_output.1} parent=1 // pred_check
      _
    $region7: #{glob_avg_output.1} parent=1 // pred_check_branch
      %12 = sbr.rel (0) target = $region9
    $region8: #{glob_avg_output.1} parent=1 // pred_region
      _
    $region9: #{glob_avg_output.1} parent=1 // pred_fallthru
      _
    // Predicated region
    $region10: #{glob_avg_output.1} parent=1 // pred_check
      _
    $region11: #{glob_avg_output.1} parent=1 // pred_check_branch
      %14 = sbr.rel (0) target = $region13
    $region12: #{glob_avg_output.1} parent=1 // pred_region
      _
    $region13: #{glob_avg_output.1} parent=1 // pred_fallthru
      _
    %v15 = vld [vmem:[%s0] sm:$0xff]
    %v16 = vld [vmem:[%s1] sm:$0xff]
    %v17 = vld [vmem:[%s1 + $0x8] sm:$0xff]
    %v18 = vld [vmem:[%s1 + $0x10] sm:$0xff]
    %v19 = vld [vmem:[%s1 + $0x18] sm:$0xff]
    %v20 = vld [vmem:[%s1 + $0x20] sm:$0xff]
    %v21 = vld [vmem:[%s1 + $0x28] sm:$0xff]
    %v22 = vld [vmem:[%s1 + $0x30] sm:$0xff]
    %v23 = vld [vmem:[%s1 + $0x38] sm:$0xff]
    %v24 = vld [vmem:[%s1 + $0x40] sm:$0xff]
    %v25 = vld [vmem:[%s1 + $0x48] sm:$0xff]
    %v26 = vld [vmem:[%s1 + $0x50] sm:$0xff]
    %v27 = vld [vmem:[%s1 + $0x58] sm:$0xff]
    %v28 = vld [vmem:[%s1 + $0x60] sm:$0xff]
    %v29 = vld [vmem:[%s1 + $0x68] sm:$0xff]
    %v30 = vld [vmem:[%s1 + $0x70] sm:$0xff]
    %v31 = vld [vmem:[%s1 + $0x78] sm:$0xff]
    %v32 = vld [vmem:[%s1 + $0x80] sm:$0xff]
    %v33 = vld [vmem:[%s1 + $0x88] sm:$0xff]
    %v34 = vld [vmem:[%s1 + $0x90] sm:$0xff]
    %v35 = vld [vmem:[%s1 + $0x98] sm:$0xff]
    %v36 = vld [vmem:[%s1 + $0xa0] sm:$0xff]
    %v37 = vld [vmem:[%s1 + $0xa8] sm:$0xff]
    %v38 = vld [vmem:[%s1 + $0xb0] sm:$0xff]
    %v39 = vld [vmem:[%s1 + $0xb8] sm:$0xff]
    %v40 = vld [vmem:[%s1 + $0xc0] sm:$0xff]
    %v41 = vld [vmem:[%s1 + $0xc8] sm:$0xff]
    %v42 = vld [vmem:[%s1 + $0xd0] sm:$0xff]
    %v43 = vld [vmem:[%s1 + $0xd8] sm:$0xff]
    %v44 = vld [vmem:[%s1 + $0xe0] sm:$0xff]
    %v45 = vld [vmem:[%s1 + $0xe8] sm:$0xff]
    %v46 = vld [vmem:[%s1 + $0xf0] sm:$0xff]
    %v47 = vld [vmem:[%s1 + $0xf8] sm:$0xff]
    %v48 = vld [vmem:[%s1 + $0x100] sm:$0xff]
    %v49 = vld [vmem:[%s1 + $0x108] sm:$0xff]
    %v50 = vld [vmem:[%s1 + $0x110] sm:$0xff]
    %v51 = vld [vmem:[%s1 + $0x118] sm:$0xff]
    %v52 = vld [vmem:[%s1 + $0x120] sm:$0xff]
    %v53 = vld [vmem:[%s1 + $0x128] sm:$0xff]
    %v54 = vld [vmem:[%s1 + $0x130] sm:$0xff]
    %v55 = vld [vmem:[%s1 + $0x138] sm:$0xff]
    %v56 = vld [vmem:[%s1 + $0x140] sm:$0xff]
    %v57 = vld [vmem:[%s1 + $0x148] sm:$0xff]
    %v58 = vld [vmem:[%s1 + $0x150] sm:$0xff]
    %v59 = vld [vmem:[%s1 + $0x158] sm:$0xff]
    %v60 = vld [vmem:[%s1 + $0x160] sm:$0xff]
    %v61 = vld [vmem:[%s1 + $0x168] sm:$0xff]
    %v62 = vld [vmem:[%s1 + $0x170] sm:$0xff]
    %v63 = vld [vmem:[%s1 + $0x178] sm:$0xff]
    %v64 = vld [vmem:[%s1 + $0x180] sm:$0xff]
    %v65 = vld [vmem:[%s1 + $0x188] sm:$0xff]
    %v66 = vld [vmem:[%s1 + $0x190] sm:$0xff]
    %v67 = vld [vmem:[%s1 + $0x198] sm:$0xff]
    %v68 = vld [vmem:[%s1 + $0x1a0] sm:$0xff]
    %v69 = vld [vmem:[%s1 + $0x1a8] sm:$0xff]
    %v70 = vld [vmem:[%s1 + $0x1b0] sm:$0xff]
    %v71 = vld [vmem:[%s1 + $0x1b8] sm:$0xff]
    %v72 = vld [vmem:[%s1 + $0x1c0] sm:$0xff]
    %v73 = vld [vmem:[%s1 + $0x1c8] sm:$0xff]
    %v74 = vld [vmem:[%s1 + $0x1d0] sm:$0xff]
    %v75 = vld [vmem:[%s1 + $0x1d8] sm:$0xff]
    %v76 = vld [vmem:[%s1 + $0x1e0] sm:$0xff]
    %v77 = vld [vmem:[%s1 + $0x1e8] sm:$0xff]
    %v78 = vld [vmem:[%s1 + $0x1f0] sm:$0xff]
    %v79 = vld [vmem:[%s1 + $0x1f8] sm:$0xff]
    %v80 = vld [vmem:[%s2] sm:$0x1]
    %v82 = vperm.slane %v80, 0
    %85 = vst [vmem:[#allocation1] ss:$4 sm:$0xff] %v15
    %v86 = vld.sshfl [vmem:[#allocation1] sm:$0xff pattern:$0x73625140]
    %v87 = vld.sshfl [vmem:[#allocation1 + $0x8] sm:$0xff pattern:$0x73625140]
    %v88 = vld.sshfl [vmem:[#allocation1 + $0x10] sm:$0xff pattern:$0x73625140]
    %v89 = vld.sshfl [vmem:[#allocation1 + $0x18] sm:$0xff pattern:$0x73625140]
    %94 = vmatpush.msra.mxu0 %v31
    %95 = vmatpush.msra.mxu0 %v30
    %96 = vmatpush.msra.mxu0 %v29
    %97 = vmatpush.msra.mxu0 %v28
    %98 = vmatpush.msra.mxu0 %v27
    %99 = vmatpush.msra.mxu0 %v26
    %100 = vmatpush.msra.mxu0 %v25
    %101 = vmatpush.msra.mxu0 %v24
    %102 = vmatpush.msra.mxu0 %v23
    %103 = vmatpush.msra.mxu0 %v22
    %104 = vmatpush.msra.mxu0 %v21
    %105 = vmatpush.msra.mxu0 %v20
    %106 = vmatpush.msra.mxu0 %v19
    %107 = vmatpush.msra.mxu0 %v18
    %108 = vmatpush.msra.mxu0 %v17
    %109 = vmatpush.msra.mxu0 %v16
    %110 = vmatmul.f32.gmra.mxu0 %v86
    %v111 = vpop.f32.mrf.mxu0
    %v112 = vadd.f32 %v82, %v111
    %113 = vdwg.mxu0
    %114 = vmatpush.msra.mxu0 %v47
    %115 = vmatpush.msra.mxu0 %v46
    %116 = vmatpush.msra.mxu0 %v45
    %117 = vmatpush.msra.mxu0 %v44
    %118 = vmatpush.msra.mxu0 %v43
    %119 = vmatpush.msra.mxu0 %v42
    %120 = vmatpush.msra.mxu0 %v41
    %121 = vmatpush.msra.mxu0 %v40
    %122 = vmatpush.msra.mxu0 %v39
    %123 = vmatpush.msra.mxu0 %v38
    %124 = vmatpush.msra.mxu0 %v37
    %125 = vmatpush.msra.mxu0 %v36
    %126 = vmatpush.msra.mxu0 %v35
    %127 = vmatpush.msra.mxu0 %v34
    %128 = vmatpush.msra.mxu0 %v33
    %129 = vmatpush.msra.mxu0 %v32
    %130 = vmatmul.f32.gmra.mxu0 %v87
    %v131 = vpop.f32.mrf.mxu0
    %v132 = vadd.f32 %v112, %v131
    %133 = vdwg.mxu0
    %134 = vmatpush.msra.mxu0 %v63
    %135 = vmatpush.msra.mxu0 %v62
    %136 = vmatpush.msra.mxu0 %v61
    %137 = vmatpush.msra.mxu0 %v60
    %138 = vmatpush.msra.mxu0 %v59
    %139 = vmatpush.msra.mxu0 %v58
    %140 = vmatpush.msra.mxu0 %v57
    %141 = vmatpush.msra.mxu0 %v56
    %142 = vmatpush.msra.mxu0 %v55
    %143 = vmatpush.msra.mxu0 %v54
    %144 = vmatpush.msra.mxu0 %v53
    %145 = vmatpush.msra.mxu0 %v52
    %146 = vmatpush.msra.mxu0 %v51
    %147 = vmatpush.msra.mxu0 %v50
    %148 = vmatpush.msra.mxu0 %v49
    %149 = vmatpush.msra.mxu0 %v48
    %150 = vmatmul.f32.gmra.mxu0 %v88
    %v151 = vpop.f32.mrf.mxu0
    %v152 = vadd.f32 %v132, %v151
    %153 = vdwg.mxu0
    %154 = vmatpush.msra.mxu0 %v79
    %155 = vmatpush.msra.mxu0 %v78
    %156 = vmatpush.msra.mxu0 %v77
    %157 = vmatpush.msra.mxu0 %v76
    %158 = vmatpush.msra.mxu0 %v75
    %159 = vmatpush.msra.mxu0 %v74
    %160 = vmatpush.msra.mxu0 %v73
    %161 = vmatpush.msra.mxu0 %v72
    %162 = vmatpush.msra.mxu0 %v71
    %163 = vmatpush.msra.mxu0 %v70
    %164 = vmatpush.msra.mxu0 %v69
    %165 = vmatpush.msra.mxu0 %v68
    %166 = vmatpush.msra.mxu0 %v67
    %167 = vmatpush.msra.mxu0 %v66
    %168 = vmatpush.msra.mxu0 %v65
    %169 = vmatpush.msra.mxu0 %v64
    %170 = vmatmul.f32.gmra.mxu0 %v89
    %v171 = vpop.f32.mrf.mxu0
    %v172 = vadd.f32 %v152, %v171
    %173 = vdwg.mxu0
    %174 = vst [vmem:[#allocation2] sm:$0x3] %v172
    // Predicated region
    $region14: #{glob_avg_output.1} parent=1 // pred_check
      _
    $region15: #{glob_avg_output.1} parent=1 // pred_check_branch
      %176 = sbr.rel (0) target = $region17
    $region16: #{glob_avg_output.1} parent=1 // pred_region
      %178 = vsyncadd [#allocation3], 0
      %s180 = sshll.u32 [#allocation2], 4
      %s181 = int_to_ptr.vmem [resolvable:$true] %s180
      %s182 = sshll.u32 %s3, 4
      %s183 = int_to_ptr.hbm [resolvable:$true] %s182
      %185 = dma.vmem_to_hbm [thread:$0]  %s181, 32, %s183, [#allocation3]
    $region17: #{glob_avg_output.1} parent=1 // pred_fallthru
      _
    // Predicated region
    $region18: #{glob_avg_output.1} parent=1 // pred_check
      _
    $region19: #{glob_avg_output.1} parent=1 // pred_check_branch
      %187 = sbr.rel (0) target = $region21
    $region20: #{glob_avg_output.1} parent=1 // pred_region
      %189 = dma.done [#allocation3], 32
    $region21: #{glob_avg_output.1} parent=1 // pred_fallthru
      _
    %190 = vsyncpa [#allocation3], 1

</llo_original>
